<compile_context>
chip_gen: v5e
topology: v5e:2x2
jax: 0.10.0
libtpu: 0.0.40
codegen_flags: <defaults>
</compile_context>

<pallas_src>
import numpy as np
import jax
import jax.numpy as jnp
from jax.experimental import pallas as pl
from jax.experimental.pallas import tpu as pltpu

EMBED_DIM = 32
N_HEAD = 4
Q_DIM = 16
V_DIM = 16
WINDOW_SIZE = 3
BATCH = 2
SEQ = 8

HQ = N_HEAD * Q_DIM          # 64
HV = N_HEAD * V_DIM          # 64
T = BATCH * SEQ              # flattened batch*seq rows (16)
NG = WINDOW_SIZE + 1         # window columns + one "all columns" (V-sum) group
HALF = WINDOW_SIZE // 2
PAD = 128                    # lane-aligned segment width for Q / K / V


# ---------------------------------------------------------------------------------------------
# Host-side constants (built once with numpy, passed to the kernel as VMEM operands).
# ---------------------------------------------------------------------------------------------
def _build_constants():
    # Fused per-head selector: sums each head's Q_DIM lanes and broadcasts the result over that
    # head's V_DIM lanes in one matmul:  (q*k) @ head_sel -> (rows, PAD) scores.
    head_sel = np.zeros((PAD, PAD), np.float32)
    for i in range(HQ):
        for j in range(HV):
            if i // Q_DIM == j // V_DIM:
                head_sel[i, j] = 1.0

    # Validity of each diagonal offset per flattened row (masks the batch-wrapping rolls).
    r = np.arange(T) % SEQ
    valid = np.zeros((WINDOW_SIZE * T, PAD), np.float32)
    for g, di in enumerate(range(-HALF, HALF + 1)):
        ok = ((r + di >= 0) & (r + di <= SEQ - 1)).astype(np.float32)     # (T,)
        valid[g * T:(g + 1) * T, :] = ok[:, None]

    # Row selector over the flattened batch*seq axis:
    #   group g <  WINDOW_SIZE : pick V of this row's batch at absolute sequence position g
    #   group g == WINDOW_SIZE : sum V of this row's batch over all positions
    sel = np.zeros((NG * T, T), np.float32)
    for t in range(T):
        b = t // SEQ
        for g in range(WINDOW_SIZE):
            sel[g * T + t, b * SEQ + g] = 1.0
        sel[WINDOW_SIZE * T + t, b * SEQ:(b + 1) * SEQ] = 1.0
    return head_sel, valid, sel


HEAD_SEL_NP, VALID_NP, SEL_NP = _build_constants()


# ---------------------------------------------------------------------------------------------
# Kernel: single step, everything resident in VMEM.
# ---------------------------------------------------------------------------------------------
def mhswa_kernel(x_ref, wqkv_ref, bqkv_ref, hsel_ref, valid_ref, sel_ref,
                 wo_ref, bo_ref, out_ref):
    f32 = jnp.float32

    # Fused, lane-aligned QKV projection (1/sqrt(embed_dim) already folded into Wq/bq).
    qkv = jnp.dot(x_ref[...], wqkv_ref[...], preferred_element_type=f32) + bqkv_ref[...]
    q = qkv[:, 0 * PAD:1 * PAD]          # (T, 128), lanes >= HQ are zero
    k = qkv[:, 1 * PAD:2 * PAD]
    v = qkv[:, 2 * PAD:3 * PAD]

    # All WINDOW_SIZE diagonal products stacked along sublanes -> ONE score matmul.
    # k_shift[t] = k[(t + di) mod T]; cross-batch wraps are zeroed by the valid mask below.
    qk = jnp.concatenate(
        [q * (k if di == 0 else pltpu.roll(k, shift=(-di) % T, axis=0))
         for di in range(-HALF, HALF + 1)],
        axis=0)                                                            # (W*T, 128)
    scores = jnp.dot(qk, hsel_ref[...], preferred_element_type=f32)       # (W*T, 128)
    scores = scores * valid_ref[...]      # invalid / wrapped diagonals -> exactly 0

    # V gathered per group: rows [g*T:(g+1)*T] hold V[col g] of the row's batch,
    # rows [W*T:] hold the per-batch V sum (contribution of every zero softmax column).
    v_sel = jnp.dot(sel_ref[...], v, preferred_element_type=f32)          # (NG*T, 128)

    # Analytic softmax over the reference's sparse column matrix.
    # m = row max over the written window scores AND the untouched zero columns (hence init 0).
    m = jnp.zeros((T, PAD), f32)
    for g in range(WINDOW_SIZE):
        m = jnp.maximum(m, scores[g * T:(g + 1) * T])
    e0 = jnp.exp(-m)                                   # weight of every zero column

    z = SEQ * e0                                       # S zero-column exp terms (+ corrections)
    acc = e0 * v_sel[WINDOW_SIZE * T:, :]              # e0 * sum_j V[j]  (per batch)
    for g in range(WINDOW_SIZE):
        # masked scores are exactly 0 -> coeff = exp(0-m)-e0 = 0 automatically (no where needed)
        c = jnp.exp(scores[g * T:(g + 1) * T] - m) - e0
        z = z + c
        acc = acc + c * v_sel[g * T:(g + 1) * T, :]

    attn = acc / z                                     # exact normalization (tight numerics)

    # Output projection (padded attn lanes >= HV are exactly zero, as are the padded Wo rows).
    out = jnp.dot(attn, wo_ref[...], preferred_element_type=f32) + bo_ref[...]
    out_ref[...] = out.astype(out_ref.dtype)


# ---------------------------------------------------------------------------------------------
# Wrapper
# ---------------------------------------------------------------------------------------------
@jax.jit
def mhswa_forward(x, params):
    Wq, bq, Wk, bk, Wv, bv, Wo, bo = params
    B, S, E = x.shape
    assert (B, S, E) == (BATCH, SEQ, EMBED_DIM), "kernel compiled for fixed module constants"

    scale = 1.0 / float(E) ** 0.5
    # Fused + lane-aligned QKV weights: each segment starts at a lane multiple of 128.
    Wqkv = jnp.zeros((E, 3 * PAD), jnp.float32)
    Wqkv = (Wqkv.at[:, 0:HQ].set(Wq * scale)
                 .at[:, PAD:PAD + HQ].set(Wk)
                 .at[:, 2 * PAD:2 * PAD + HV].set(Wv))
    bqkv = jnp.zeros((1, 3 * PAD), jnp.float32)
    bqkv = (bqkv.at[:, 0:HQ].set(bq * scale)
                 .at[:, PAD:PAD + HQ].set(bk)
                 .at[:, 2 * PAD:2 * PAD + HV].set(bv))
    Wo_pad = jnp.zeros((PAD, E), jnp.float32).at[:HV, :].set(Wo)

    xf = x.reshape(B * S, E)
    out = pl.pallas_call(                      # no grid: single step, all operands whole in VMEM
        mhswa_kernel,
        out_shape=jax.ShapeDtypeStruct((B * S, E), jnp.float32),
    )(xf, Wqkv, bqkv,
      jnp.asarray(HEAD_SEL_NP), jnp.asarray(VALID_NP), jnp.asarray(SEL_NP),
      Wo_pad, bo)
    return out.reshape(B, S, E)


# ---------------------------------------------------------------------------------------------
# Pure-JAX transcription of the PyTorch forward (verification only).
# ---------------------------------------------------------------------------------------------
def reference(x, params):
    Wq, bq, Wk, bk, Wv, bv, Wo, bo = params
    B, S, E = x.shape
    Q = (x @ Wq + bq).reshape(B, S, N_HEAD, Q_DIM).transpose(0, 2, 1, 3)
    K = (x @ Wk + bk).reshape(B, S, N_HEAD, Q_DIM).transpose(0, 2, 1, 3)
    V = (x @ Wv + bv).reshape(B, S, N_HEAD, V_DIM).transpose(0, 2, 1, 3)
    cols = jnp.zeros((B, N_HEAD, S, S), jnp.float32)
    half = WINDOW_SIZE // 2
    for i, di in enumerate(range(-half, half + 1)):
        if di >= 0:
            ii = jnp.arange(0, S - di)
            jj = jnp.arange(di, S)
        else:
            ii = jnp.arange(-di, S)
            jj = jnp.arange(0, S + di)
        c = jnp.einsum('abid,abid->abi', Q[:, :, ii, :], K[:, :, jj, :]) / (E ** 0.5)
        cols = cols.at[:, :, ii, i].set(c)
    p = jax.nn.softmax(cols, axis=-1)
    out = p @ V
    out = out.transpose(0, 2, 1, 3).reshape(B, S, N_HEAD * V_DIM)
    return out @ Wo + bo


if __name__ == "__main__":
    key = jax.random.PRNGKey(0)
    ks = jax.random.split(key, 9)

    x = jax.random.normal(ks[0], (BATCH, SEQ, EMBED_DIM), jnp.float32)
    Wq = jax.random.normal(ks[1], (EMBED_DIM, HQ), jnp.float32) * 0.05
    bq = jax.random.normal(ks[2], (1, HQ), jnp.float32) * 0.05
    Wk = jax.random.normal(ks[3], (EMBED_DIM, HQ), jnp.float32) * 0.05
    bk = jax.random.normal(ks[4], (1, HQ), jnp.float32) * 0.05
    Wv = jax.random.normal(ks[5], (EMBED_DIM, HV), jnp.float32) * 0.05
    bv = jax.random.normal(ks[6], (1, HV), jnp.float32) * 0.05
    Wo = jax.random.normal(ks[7], (HV, EMBED_DIM), jnp.float32) * 0.05
    bo = jax.random.normal(ks[8], (1, EMBED_DIM), jnp.float32) * 0.05
    params = (Wq, bq, Wk, bk, Wv, bv, Wo, bo)

    out = mhswa_forward(x, params)
    out = jax.block_until_ready(out)

    ref = reference(x, params)
    assert out.shape == (BATCH, SEQ, EMBED_DIM)
    err = float(jnp.max(jnp.abs(out - ref)))
    # exact normalization -> tight tolerance (only MXU f32 rounding / summation-order noise)
    assert jnp.allclose(out, ref, atol=1e-4, rtol=1e-4), err
    print("KERNEL_OK")
</pallas_src>

<mosaic_0001>
module attributes {stable_mosaic.version = 11 : i64} {
  func.func @mhswa_kernel(%arg0: memref<16x32xf32, #tpu.memory_space<vmem>>, %arg1: memref<32x384xf32, #tpu.memory_space<vmem>>, %arg2: memref<1x384xf32, #tpu.memory_space<vmem>>, %arg3: memref<128x128xf32, #tpu.memory_space<vmem>>, %arg4: memref<48x128xf32, #tpu.memory_space<vmem>>, %arg5: memref<64x16xf32, #tpu.memory_space<vmem>>, %arg6: memref<128x32xf32, #tpu.memory_space<vmem>>, %arg7: memref<1x32xf32, #tpu.memory_space<vmem>>, %arg8: memref<16x32xf32, #tpu.memory_space<vmem>>) attributes {dimension_semantics = [], scalar_prefetch = 0 : i64, scratch_operands = 0 : i64, tpu.core_type = #tpu.core_type<tc>} {
    %c0 = arith.constant 0 : index
    %c0_0 = arith.constant 0 : index
    %0 = vector.load %arg0[%c0, %c0_0] : memref<16x32xf32, #tpu.memory_space<vmem>>, vector<16x32xf32>
    %c0_1 = arith.constant 0 : index
    %c0_2 = arith.constant 0 : index
    %1 = vector.load %arg1[%c0_1, %c0_2] : memref<32x384xf32, #tpu.memory_space<vmem>>, vector<32x384xf32>
    %cst = arith.constant dense<0.000000e+00> : vector<16x384xf32>
    %2 = tpu.matmul %0, %1, %cst {dimension_numbers = #tpu.dot_dimension_numbers<[1], [0], [0], [1], [0, 0, 1, 1], [], []>} : vector<16x32xf32>, vector<32x384xf32>, vector<16x384xf32> -> vector<16x384xf32>
    %c0_3 = arith.constant 0 : index
    %c0_4 = arith.constant 0 : index
    %3 = vector.load %arg2[%c0_3, %c0_4] : memref<1x384xf32, #tpu.memory_space<vmem>>, vector<1x384xf32>
    %4 = vector.broadcast %3 : vector<1x384xf32> to vector<16x384xf32>
    %5 = arith.addf %2, %4 : vector<16x384xf32>
    %6 = vector.extract_strided_slice %5 {offsets = [0, 0], sizes = [16, 128], strides = [1, 1]} : vector<16x384xf32> to vector<16x128xf32>
    %7 = vector.extract_strided_slice %5 {offsets = [0, 128], sizes = [16, 128], strides = [1, 1]} : vector<16x384xf32> to vector<16x128xf32>
    %8 = vector.extract_strided_slice %5 {offsets = [0, 256], sizes = [16, 128], strides = [1, 1]} : vector<16x384xf32> to vector<16x128xf32>
    %c1_i32 = arith.constant 1 : i32
    %9 = tpu.dynamic_rotate %7 by %c1_i32 dim 0 : vector<16x128xf32>, i32 -> vector<16x128xf32>
    %10 = arith.mulf %6, %9 : vector<16x128xf32>
    %11 = arith.mulf %6, %7 : vector<16x128xf32>
    %c15_i32 = arith.constant 15 : i32
    %12 = tpu.dynamic_rotate %7 by %c15_i32 dim 0 : vector<16x128xf32>, i32 -> vector<16x128xf32>
    %13 = arith.mulf %6, %12 : vector<16x128xf32>
    %14 = tpu.concatenate %10, %11, %13 in 0 : vector<16x128xf32>, vector<16x128xf32>, vector<16x128xf32> -> vector<48x128xf32>
    %c0_5 = arith.constant 0 : index
    %c0_6 = arith.constant 0 : index
    %15 = vector.load %arg3[%c0_5, %c0_6] : memref<128x128xf32, #tpu.memory_space<vmem>>, vector<128x128xf32>
    %cst_7 = arith.constant dense<0.000000e+00> : vector<48x128xf32>
    %16 = tpu.matmul %14, %15, %cst_7 {dimension_numbers = #tpu.dot_dimension_numbers<[1], [0], [0], [1], [0, 0, 1, 1], [], []>} : vector<48x128xf32>, vector<128x128xf32>, vector<48x128xf32> -> vector<48x128xf32>
    %c0_8 = arith.constant 0 : index
    %c0_9 = arith.constant 0 : index
    %17 = vector.load %arg4[%c0_8, %c0_9] : memref<48x128xf32, #tpu.memory_space<vmem>>, vector<48x128xf32>
    %18 = arith.mulf %16, %17 : vector<48x128xf32>
    %c0_10 = arith.constant 0 : index
    %c0_11 = arith.constant 0 : index
    %19 = vector.load %arg5[%c0_10, %c0_11] : memref<64x16xf32, #tpu.memory_space<vmem>>, vector<64x16xf32>
    %cst_12 = arith.constant dense<0.000000e+00> : vector<64x128xf32>
    %20 = tpu.matmul %19, %8, %cst_12 {dimension_numbers = #tpu.dot_dimension_numbers<[1], [0], [0], [1], [0, 0, 1, 1], [], []>} : vector<64x16xf32>, vector<16x128xf32>, vector<64x128xf32> -> vector<64x128xf32>
    %cst_13 = arith.constant 0.000000e+00 : f32
    %21 = vector.broadcast %cst_13 : f32 to vector<16x128xf32>
    %22 = vector.extract_strided_slice %18 {offsets = [0, 0], sizes = [16, 128], strides = [1, 1]} : vector<48x128xf32> to vector<16x128xf32>
    %23 = arith.maximumf %21, %22 : vector<16x128xf32>
    %24 = vector.extract_strided_slice %18 {offsets = [16, 0], sizes = [16, 128], strides = [1, 1]} : vector<48x128xf32> to vector<16x128xf32>
    %25 = arith.maximumf %23, %24 : vector<16x128xf32>
    %26 = vector.extract_strided_slice %18 {offsets = [32, 0], sizes = [16, 128], strides = [1, 1]} : vector<48x128xf32> to vector<16x128xf32>
    %27 = arith.maximumf %25, %26 : vector<16x128xf32>
    %cst_14 = arith.constant 0.000000e+00 : f32
    %28 = vector.broadcast %cst_14 : f32 to vector<16x128xf32>
    %29 = arith.subf %28, %27 : vector<16x128xf32>
    %30 = math.exp %29 : vector<16x128xf32>
    %cst_15 = arith.constant 8.000000e+00 : f32
    %31 = vector.broadcast %cst_15 : f32 to vector<16x128xf32>
    %32 = arith.mulf %31, %30 : vector<16x128xf32>
    %33 = vector.extract_strided_slice %20 {offsets = [48, 0], sizes = [16, 128], strides = [1, 1]} : vector<64x128xf32> to vector<16x128xf32>
    %34 = arith.mulf %30, %33 : vector<16x128xf32>
    %35 = vector.extract_strided_slice %18 {offsets = [0, 0], sizes = [16, 128], strides = [1, 1]} : vector<48x128xf32> to vector<16x128xf32>
    %36 = arith.subf %35, %27 : vector<16x128xf32>
    %37 = math.exp %36 : vector<16x128xf32>
    %38 = arith.subf %37, %30 : vector<16x128xf32>
    %39 = arith.addf %32, %38 : vector<16x128xf32>
    %40 = vector.extract_strided_slice %20 {offsets = [0, 0], sizes = [16, 128], strides = [1, 1]} : vector<64x128xf32> to vector<16x128xf32>
    %41 = arith.mulf %38, %40 : vector<16x128xf32>
    %42 = arith.addf %34, %41 : vector<16x128xf32>
    %43 = vector.extract_strided_slice %18 {offsets = [16, 0], sizes = [16, 128], strides = [1, 1]} : vector<48x128xf32> to vector<16x128xf32>
    %44 = arith.subf %43, %27 : vector<16x128xf32>
    %45 = math.exp %44 : vector<16x128xf32>
    %46 = arith.subf %45, %30 : vector<16x128xf32>
    %47 = arith.addf %39, %46 : vector<16x128xf32>
    %48 = vector.extract_strided_slice %20 {offsets = [16, 0], sizes = [16, 128], strides = [1, 1]} : vector<64x128xf32> to vector<16x128xf32>
    %49 = arith.mulf %46, %48 : vector<16x128xf32>
    %50 = arith.addf %42, %49 : vector<16x128xf32>
    %51 = vector.extract_strided_slice %18 {offsets = [32, 0], sizes = [16, 128], strides = [1, 1]} : vector<48x128xf32> to vector<16x128xf32>
    %52 = arith.subf %51, %27 : vector<16x128xf32>
    %53 = math.exp %52 : vector<16x128xf32>
    %54 = arith.subf %53, %30 : vector<16x128xf32>
    %55 = arith.addf %47, %54 : vector<16x128xf32>
    %56 = vector.extract_strided_slice %20 {offsets = [32, 0], sizes = [16, 128], strides = [1, 1]} : vector<64x128xf32> to vector<16x128xf32>
    %57 = arith.mulf %54, %56 : vector<16x128xf32>
    %58 = arith.addf %50, %57 : vector<16x128xf32>
    %59 = arith.divf %58, %55 : vector<16x128xf32>
    %c0_16 = arith.constant 0 : index
    %c0_17 = arith.constant 0 : index
    %60 = vector.load %arg6[%c0_16, %c0_17] : memref<128x32xf32, #tpu.memory_space<vmem>>, vector<128x32xf32>
    %cst_18 = arith.constant dense<0.000000e+00> : vector<16x32xf32>
    %61 = tpu.matmul %59, %60, %cst_18 {dimension_numbers = #tpu.dot_dimension_numbers<[1], [0], [0], [1], [0, 0, 1, 1], [], []>} : vector<16x128xf32>, vector<128x32xf32>, vector<16x32xf32> -> vector<16x32xf32>
    %c0_19 = arith.constant 0 : index
    %c0_20 = arith.constant 0 : index
    %62 = vector.load %arg7[%c0_19, %c0_20] : memref<1x32xf32, #tpu.memory_space<vmem>>, vector<1x32xf32>
    %63 = vector.broadcast %62 : vector<1x32xf32> to vector<16x32xf32>
    %64 = arith.addf %61, %63 : vector<16x32xf32>
    %c0_21 = arith.constant 0 : index
    %c0_22 = arith.constant 0 : index
    %65 = vector.load %arg8[%c0_21, %c0_22] : memref<16x32xf32, #tpu.memory_space<vmem>>, vector<16x32xf32>
    tpu.vector_store %arg8[%c0_21, %c0_22], %64 {strides = array<i32>} : memref<16x32xf32, #tpu.memory_space<vmem>>, vector<16x32xf32>,
    return
  }
}

</mosaic_0001>

<llo_original>
// kernel: mhswa_forward.1
$region0: #{mhswa_forward.1}
  #allocation0 [shape = 'u32[]', space=smem, size = 0x4, offset = 0x4, fixed_abs, tag = 'smem constant byte address 0x4 - core index']
  #allocation1 [shape = 'u32[72,128]{1,0:T(1,128)}', space=vmem, size = 0x9000, scoped, tag = 'internal scratch']
  %s0 = inlined_call_operand.vmem [shape: f32[16,32], index: 0, kind: input, shape index: {}]
  %s1 = inlined_call_operand.vmem [shape: f32[32,384], index: 1, kind: input, shape index: {}]
  %s2 = inlined_call_operand.vmem [shape: f32[1,384], index: 2, kind: input, shape index: {}]
  %s3 = inlined_call_operand.vmem [shape: f32[128,128], index: 3, kind: input, shape index: {}]
  %s4 = inlined_call_operand.vmem [shape: f32[48,128], index: 4, kind: input, shape index: {}]
  %s5 = inlined_call_operand.vmem [shape: f32[64,16], index: 5, kind: input, shape index: {}]
  %s6 = inlined_call_operand.vmem [shape: f32[128,32], index: 6, kind: input, shape index: {}]
  %s7 = inlined_call_operand.vmem [shape: f32[1,32], index: 7, kind: input, shape index: {}]
  %s8 = inlined_call_operand.hbm [shape: f32[16,32], index: 8, kind: output, shape index: {}]
  %s9 = sld [smem:[#allocation0]]
  $region42: #{mhswa_forward.1} parent=0
    _
  %s11 = ssub.s32 1, %s9
  %s12 = scalar_select 0, %s11, %s9
  $region1: #{mhswa_forward.1} parent=0
    #allocation2 [shape = 'u8[8192]{0}', space=vmem, size = 0x2000, scoped, tag = 'output window, operand 0, single buffered']
    #allocation3 [shape = 's32[1]{0}', space=sflag, size = 0x4, scoped, tag = 'scoped memory for mhswa_forward.1']
    %13 = vsyncpa [#allocation3], 0
    // Predicated region
    $region2: #{mhswa_forward.1} parent=1 // pred_check
      _
    $region3: #{mhswa_forward.1} parent=1 // pred_check_branch
      %15 = sbr.rel (0) target = $region5
    $region4: #{mhswa_forward.1} parent=1 // pred_region
      _
    $region5: #{mhswa_forward.1} parent=1 // pred_fallthru
      _
    // Predicated region
    $region6: #{mhswa_forward.1} parent=1 // pred_check
      _
    $region7: #{mhswa_forward.1} parent=1 // pred_check_branch
      %17 = sbr.rel (0) target = $region9
    $region8: #{mhswa_forward.1} parent=1 // pred_region
      _
    $region9: #{mhswa_forward.1} parent=1 // pred_fallthru
      _
    // Predicated region
    $region10: #{mhswa_forward.1} parent=1 // pred_check
      _
    $region11: #{mhswa_forward.1} parent=1 // pred_check_branch
      %19 = sbr.rel (0) target = $region13
    $region12: #{mhswa_forward.1} parent=1 // pred_region
      _
    $region13: #{mhswa_forward.1} parent=1 // pred_fallthru
      _
    // Predicated region
    $region14: #{mhswa_forward.1} parent=1 // pred_check
      _
    $region15: #{mhswa_forward.1} parent=1 // pred_check_branch
      %21 = sbr.rel (0) target = $region17
    $region16: #{mhswa_forward.1} parent=1 // pred_region
      _
    $region17: #{mhswa_forward.1} parent=1 // pred_fallthru
      _
    // Predicated region
    $region18: #{mhswa_forward.1} parent=1 // pred_check
      _
    $region19: #{mhswa_forward.1} parent=1 // pred_check_branch
      %23 = sbr.rel (0) target = $region21
    $region20: #{mhswa_forward.1} parent=1 // pred_region
      _
    $region21: #{mhswa_forward.1} parent=1 // pred_fallthru
      _
    // Predicated region
    $region22: #{mhswa_forward.1} parent=1 // pred_check
      _
    $region23: #{mhswa_forward.1} parent=1 // pred_check_branch
      %25 = sbr.rel (0) target = $region25
    $region24: #{mhswa_forward.1} parent=1 // pred_region
      _
    $region25: #{mhswa_forward.1} parent=1 // pred_fallthru
      _
    // Predicated region
    $region26: #{mhswa_forward.1} parent=1 // pred_check
      _
    $region27: #{mhswa_forward.1} parent=1 // pred_check_branch
      %27 = sbr.rel (0) target = $region29
    $region28: #{mhswa_forward.1} parent=1 // pred_region
      _
    $region29: #{mhswa_forward.1} parent=1 // pred_fallthru
      _
    // Predicated region
    $region30: #{mhswa_forward.1} parent=1 // pred_check
      _
    $region31: #{mhswa_forward.1} parent=1 // pred_check_branch
      %29 = sbr.rel (0) target = $region33
    $region32: #{mhswa_forward.1} parent=1 // pred_region
      _
    $region33: #{mhswa_forward.1} parent=1 // pred_fallthru
      _
    %v30 = vld [vmem:[%s0] sm:$0xff]
    %v31 = vld [vmem:[%s0 + $0x8] sm:$0xff]
    %v32 = vld [vmem:[%s1] sm:$0xff]
    %v33 = vld [vmem:[%s1 + $0x8] sm:$0xff]
    %v34 = vld [vmem:[%s1 + $0x10] sm:$0xff]
    %v35 = vld [vmem:[%s1 + $0x18] sm:$0xff]
    %v36 = vld [vmem:[%s1 + $0x20] sm:$0xff]
    %v37 = vld [vmem:[%s1 + $0x28] sm:$0xff]
    %v38 = vld [vmem:[%s1 + $0x30] sm:$0xff]
    %v39 = vld [vmem:[%s1 + $0x38] sm:$0xff]
    %v40 = vld [vmem:[%s1 + $0x40] sm:$0xff]
    %v41 = vld [vmem:[%s1 + $0x48] sm:$0xff]
    %v42 = vld [vmem:[%s1 + $0x50] sm:$0xff]
    %v43 = vld [vmem:[%s1 + $0x58] sm:$0xff]
    %v44 = vld [vmem:[%s2] sm:$0x7]
    %v46 = vperm.slane %v44, 0
    %v47 = vperm.slane %v44, 1
    %v48 = vperm.slane %v44, 2
    %vm52 = vcmask 261120
    %v54 = vsel %vm52, %v30, 0
    %v57 = vsel %vm52, %v31, 0
    %59 = vmatpush.msra.mxu0 0.0
    %60 = vmatpush.msra.mxu0 0.0
    %61 = vmatpush.msra.mxu0 0.0
    %62 = vmatpush.msra.mxu0 0.0
    %63 = vmatpush.msra.mxu0 0.0
    %64 = vmatpush.msra.mxu0 0.0
    %65 = vmatpush.msra.mxu0 0.0
    %66 = vmatpush.msra.mxu0 0.0
    %67 = vmatpush.msra.mxu0 0.0
    %68 = vmatpush.msra.mxu0 0.0
    %69 = vmatpush.msra.mxu0 0.0
    %70 = vmatpush.msra.mxu0 0.0
    %71 = vmatpush.msra.mxu0 %v41
    %72 = vmatpush.msra.mxu0 %v38
    %73 = vmatpush.msra.mxu0 %v35
    %74 = vmatpush.msra.mxu0 %v32
    %75 = vmatmul.f32.gmra.mxu0 %v54
    %v76 = vpop.f32.mrf.mxu0
    %v77 = vadd.f32 %v46, %v76
    %78 = vmatmul.f32.gmra.mxu0 %v57
    %v79 = vpop.f32.mrf.mxu0
    %v80 = vadd.f32 %v46, %v79
    %81 = vdwg.mxu0
    %82 = vmatpush.msra.mxu0 0.0
    %83 = vmatpush.msra.mxu0 0.0
    %84 = vmatpush.msra.mxu0 0.0
    %85 = vmatpush.msra.mxu0 0.0
    %86 = vmatpush.msra.mxu0 0.0
    %87 = vmatpush.msra.mxu0 0.0
    %88 = vmatpush.msra.mxu0 0.0
    %89 = vmatpush.msra.mxu0 0.0
    %90 = vmatpush.msra.mxu0 0.0
    %91 = vmatpush.msra.mxu0 0.0
    %92 = vmatpush.msra.mxu0 0.0
    %93 = vmatpush.msra.mxu0 0.0
    %94 = vmatpush.msra.mxu0 %v42
    %95 = vmatpush.msra.mxu0 %v39
    %96 = vmatpush.msra.mxu0 %v36
    %97 = vmatpush.msra.mxu0 %v33
    %98 = vmatmul.f32.gmra.mxu0 %v54
    %v99 = vpop.f32.mrf.mxu0
    %v100 = vadd.f32 %v47, %v99
    %101 = vmatmul.f32.gmra.mxu0 %v57
    %v102 = vpop.f32.mrf.mxu0
    %v103 = vadd.f32 %v47, %v102
    %104 = vdwg.mxu0
    %105 = vmatpush.msra.mxu0 0.0
    %106 = vmatpush.msra.mxu0 0.0
    %107 = vmatpush.msra.mxu0 0.0
    %108 = vmatpush.msra.mxu0 0.0
    %109 = vmatpush.msra.mxu0 0.0
    %110 = vmatpush.msra.mxu0 0.0
    %111 = vmatpush.msra.mxu0 0.0
    %112 = vmatpush.msra.mxu0 0.0
    %113 = vmatpush.msra.mxu0 0.0
    %114 = vmatpush.msra.mxu0 0.0
    %115 = vmatpush.msra.mxu0 0.0
    %116 = vmatpush.msra.mxu0 0.0
    %117 = vmatpush.msra.mxu0 %v43
    %118 = vmatpush.msra.mxu0 %v40
    %119 = vmatpush.msra.mxu0 %v37
    %120 = vmatpush.msra.mxu0 %v34
    %121 = vmatmul.f32.gmra.mxu0 %v54
    %v122 = vpop.f32.mrf.mxu0
    %v123 = vadd.f32 %v48, %v122
    %124 = vmatmul.f32.gmra.mxu0 %v57
    %v125 = vpop.f32.mrf.mxu0
    %v126 = vadd.f32 %v48, %v125
    %127 = vdwg.mxu0
    %v128 = vrot.slane %v100, 7
    %v129 = vrot.slane %v103, 7
    %v130 = vlaneseq
    %v131 = vshrl.u32 %v130, 7
    %vm132 = vcmp.lt.s32.totalorder %v131, 1
    %v133 = vsel %vm132, %v128, %v129
    %v134 = vsel %vm132, %v129, %v128
    %v135 = vmul.f32 %v77, %v134
    %v136 = vmul.f32 %v80, %v133
    %v137 = vmul.f32 %v77, %v100
    %v138 = vmul.f32 %v80, %v103
    %v139 = vrot.slane %v100, 1
    %v140 = vrot.slane %v103, 1
    %vm141 = vcmp.lt.s32.totalorder %v131, 7
    %v142 = vsel %vm141, %v139, %v140
    %v143 = vsel %vm141, %v140, %v139
    %v144 = vmul.f32 %v77, %v142
    %v145 = vmul.f32 %v80, %v143
    %v146 = vld [vmem:[%s3] sm:$0xff]
    %v147 = vld [vmem:[%s3 + $0x8] sm:$0xff]
    %v148 = vld [vmem:[%s3 + $0x10] sm:$0xff]
    %v149 = vld [vmem:[%s3 + $0x18] sm:$0xff]
    %v150 = vld [vmem:[%s3 + $0x20] sm:$0xff]
    %v151 = vld [vmem:[%s3 + $0x28] sm:$0xff]
    %v152 = vld [vmem:[%s3 + $0x30] sm:$0xff]
    %v153 = vld [vmem:[%s3 + $0x38] sm:$0xff]
    %v154 = vld [vmem:[%s3 + $0x40] sm:$0xff]
    %v155 = vld [vmem:[%s3 + $0x48] sm:$0xff]
    %v156 = vld [vmem:[%s3 + $0x50] sm:$0xff]
    %v157 = vld [vmem:[%s3 + $0x58] sm:$0xff]
    %v158 = vld [vmem:[%s3 + $0x60] sm:$0xff]
    %v159 = vld [vmem:[%s3 + $0x68] sm:$0xff]
    %v160 = vld [vmem:[%s3 + $0x70] sm:$0xff]
    %v161 = vld [vmem:[%s3 + $0x78] sm:$0xff]
    %162 = vmatpush.msra.mxu0 %v161
    %163 = vmatpush.msra.mxu0 %v160
    %164 = vmatpush.msra.mxu0 %v159
    %165 = vmatpush.msra.mxu0 %v158
    %166 = vmatpush.msra.mxu0 %v157
    %167 = vmatpush.msra.mxu0 %v156
    %168 = vmatpush.msra.mxu0 %v155
    %169 = vmatpush.msra.mxu0 %v154
    %170 = vmatpush.msra.mxu0 %v153
    %171 = vmatpush.msra.mxu0 %v152
    %172 = vmatpush.msra.mxu0 %v151
    %173 = vmatpush.msra.mxu0 %v150
    %174 = vmatpush.msra.mxu0 %v149
    %175 = vmatpush.msra.mxu0 %v148
    %176 = vmatpush.msra.mxu0 %v147
    %177 = vmatpush.msra.mxu0 %v146
    %178 = vmatmul.f32.gmra.mxu0 %v135
    %v179 = vpop.f32.mrf.mxu0
    %v180 = vadd.f32 0.0, %v179
    %181 = vmatmul.f32.gmra.mxu0 %v136
    %v182 = vpop.f32.mrf.mxu0
    %v183 = vadd.f32 0.0, %v182
    %184 = vmatmul.f32.gmra.mxu0 %v137
    %v185 = vpop.f32.mrf.mxu0
    %v186 = vadd.f32 0.0, %v185
    %187 = vmatmul.f32.gmra.mxu0 %v138
    %v188 = vpop.f32.mrf.mxu0
    %v189 = vadd.f32 0.0, %v188
    %190 = vmatmul.f32.gmra.mxu0 %v144
    %v191 = vpop.f32.mrf.mxu0
    %v192 = vadd.f32 0.0, %v191
    %193 = vmatmul.f32.gmra.mxu0 %v145
    %v194 = vpop.f32.mrf.mxu0
    %v195 = vadd.f32 0.0, %v194
    %196 = vdwg.mxu0
    %v197 = vld [vmem:[%s4] sm:$0xff]
    %v198 = vld [vmem:[%s4 + $0x8] sm:$0xff]
    %v199 = vld [vmem:[%s4 + $0x10] sm:$0xff]
    %v200 = vld [vmem:[%s4 + $0x18] sm:$0xff]
    %v201 = vld [vmem:[%s4 + $0x20] sm:$0xff]
    %v202 = vld [vmem:[%s4 + $0x28] sm:$0xff]
    %v203 = vmul.f32 %v180, %v197
    %v204 = vmul.f32 %v183, %v198
    %v205 = vmul.f32 %v186, %v199
    %v206 = vmul.f32 %v189, %v200
    %v207 = vmul.f32 %v192, %v201
    %v208 = vmul.f32 %v195, %v202
    %v209 = vld [vmem:[%s5] sm:$0xff]
    %v210 = vld [vmem:[%s5 + $0x8] sm:$0xff]
    %v211 = vld [vmem:[%s5 + $0x10] sm:$0xff]
    %v212 = vld [vmem:[%s5 + $0x18] sm:$0xff]
    %v213 = vld [vmem:[%s5 + $0x20] sm:$0xff]
    %v214 = vld [vmem:[%s5 + $0x28] sm:$0xff]
    %v215 = vld [vmem:[%s5 + $0x30] sm:$0xff]
    %v216 = vld [vmem:[%s5 + $0x38] sm:$0xff]
    %vm217 = vcmask 130048
    %v219 = vsel %vm217, %v209, 0
    %v222 = vsel %vm217, %v210, 0
    %v225 = vsel %vm217, %v211, 0
    %v228 = vsel %vm217, %v212, 0
    %v231 = vsel %vm217, %v213, 0
    %v234 = vsel %vm217, %v214, 0
    %v237 = vsel %vm217, %v215, 0
    %v240 = vsel %vm217, %v216, 0
    %242 = vmatpush.msra.mxu0 0.0
    %243 = vmatpush.msra.mxu0 0.0
    %244 = vmatpush.msra.mxu0 0.0
    %245 = vmatpush.msra.mxu0 0.0
    %246 = vmatpush.msra.mxu0 0.0
    %247 = vmatpush.msra.mxu0 0.0
    %248 = vmatpush.msra.mxu0 0.0
    %249 = vmatpush.msra.mxu0 0.0
    %250 = vmatpush.msra.mxu0 0.0
    %251 = vmatpush.msra.mxu0 0.0
    %252 = vmatpush.msra.mxu0 0.0
    %253 = vmatpush.msra.mxu0 0.0
    %254 = vmatpush.msra.mxu0 0.0
    %255 = vmatpush.msra.mxu0 0.0
    %256 = vmatpush.msra.mxu0 %v126
    %257 = vmatpush.msra.mxu0 %v123
    %258 = vmatmul.f32.gmra.mxu0 %v219
    %v259 = vpop.f32.mrf.mxu0
    %v260 = vadd.f32 0.0, %v259
    %261 = vmatmul.f32.gmra.mxu0 %v222
    %v262 = vpop.f32.mrf.mxu0
    %v263 = vadd.f32 0.0, %v262
    %264 = vmatmul.f32.gmra.mxu0 %v225
    %v265 = vpop.f32.mrf.mxu0
    %v266 = vadd.f32 0.0, %v265
    %267 = vmatmul.f32.gmra.mxu0 %v228
    %v268 = vpop.f32.mrf.mxu0
    %v269 = vadd.f32 0.0, %v268
    %270 = vmatmul.f32.gmra.mxu0 %v231
    %v271 = vpop.f32.mrf.mxu0
    %v272 = vadd.f32 0.0, %v271
    %273 = vmatmul.f32.gmra.mxu0 %v234
    %v274 = vpop.f32.mrf.mxu0
    %v275 = vadd.f32 0.0, %v274
    %276 = vmatmul.f32.gmra.mxu0 %v237
    %v277 = vpop.f32.mrf.mxu0
    %v278 = vadd.f32 0.0, %v277
    %279 = vmatmul.f32.gmra.mxu0 %v240
    %v280 = vpop.f32.mrf.mxu0
    %v281 = vadd.f32 0.0, %v280
    %282 = vdwg.mxu0
    %v283 = vmax.f32 %v203, 0.0
    %v284 = vmax.f32 %v204, 0.0
    %v285 = vmax.f32 %v283, %v205
    %v286 = vmax.f32 %v284, %v206
    %v287 = vmax.f32 %v285, %v207
    %v288 = vmax.f32 %v286, %v208
    %v289 = vsub.f32 0.0, %v287
    %v290 = vsub.f32 0.0, %v288
    %v291 = vmul.f32 %v289, 1.442695
    %v292 = vpow.pop %v291
    %v293 = vmul.f32 %v290, 1.442695
    %v294 = vpow.pop %v293
    %v295 = vmul.f32 %v292, 8.0
    %v296 = vmul.f32 %v294, 8.0
    %v297 = vmul.f32 %v292, %v278
    %v298 = vmul.f32 %v294, %v281
    %v299 = vsub.f32 %v203, %v287
    %v300 = vsub.f32 %v204, %v288
    %v301 = vmul.f32 %v299, 1.442695
    %v302 = vpow.pop %v301
    %v303 = vmul.f32 %v300, 1.442695
    %v304 = vpow.pop %v303
    %v305 = vsub.f32 %v302, %v292
    %v306 = vsub.f32 %v304, %v294
    %v307 = vadd.f32 %v295, %v305
    %v308 = vadd.f32 %v296, %v306
    %v309 = vmul.f32 %v305, %v260
    %v310 = vmul.f32 %v306, %v263
    %v311 = vadd.f32 %v297, %v309
    %v312 = vadd.f32 %v298, %v310
    %v313 = vsub.f32 %v205, %v287
    %v314 = vsub.f32 %v206, %v288
    %v315 = vmul.f32 %v313, 1.442695
    %v316 = vpow.pop %v315
    %v317 = vmul.f32 %v314, 1.442695
    %v318 = vpow.pop %v317
    %v319 = vsub.f32 %v316, %v292
    %v320 = vsub.f32 %v318, %v294
    %v321 = vadd.f32 %v307, %v319
    %v322 = vadd.f32 %v308, %v320
    %v323 = vmul.f32 %v319, %v266
    %v324 = vmul.f32 %v320, %v269
    %v325 = vadd.f32 %v311, %v323
    %v326 = vadd.f32 %v312, %v324
    %v327 = vsub.f32 %v207, %v287
    %v328 = vsub.f32 %v208, %v288
    %v329 = vmul.f32 %v327, 1.442695
    %v330 = vpow.pop %v329
    %v331 = vmul.f32 %v328, 1.442695
    %v332 = vpow.pop %v331
    %v333 = vsub.f32 %v330, %v292
    %v334 = vsub.f32 %v332, %v294
    %v335 = vadd.f32 %v321, %v333
    %v336 = vadd.f32 %v322, %v334
    %v337 = vmul.f32 %v333, %v272
    %v338 = vmul.f32 %v334, %v275
    %v339 = vadd.f32 %v325, %v337
    %v340 = vadd.f32 %v326, %v338
    %v341 = vrcp.pop %v335
    %v342 = vmul.f32 %v335, %v341
    %v343 = vsub.f32 1.0, %v342
    %v344 = vmul.f32 %v341, %v343
    %v345 = vadd.f32 %v341, %v344
    %vm346 = vweird.f32 %v335
    %vm347 = vweird.f32 %v341
    %vm348 = vmor %vm346, %vm347
    %v349 = vsel %vm348, %v341, %v345
    %v350 = vand.u32 2147483647, %v335
    %vm351 = vcmp.eq.f32.partialorder %v350, 8.507059e+37
    %v352 = vand.u32 %v335, 2147483648
    %v353 = vor.u32 1.1754944e-38, %v352
    %v354 = vsel %vm351, %v353, %v349
    %v355 = vmul.f32 %v339, %v354
    %v356 = vrcp.pop %v336
    %v357 = vmul.f32 %v336, %v356
    %v358 = vsub.f32 1.0, %v357
    %v359 = vmul.f32 %v356, %v358
    %v360 = vadd.f32 %v356, %v359
    %vm361 = vweird.f32 %v336
    %vm362 = vweird.f32 %v356
    %vm363 = vmor %vm361, %vm362
    %v364 = vsel %vm363, %v356, %v360
    %v365 = vand.u32 2147483647, %v336
    %vm366 = vcmp.eq.f32.partialorder %v365, 8.507059e+37
    %v367 = vand.u32 %v336, 2147483648
    %v368 = vor.u32 1.1754944e-38, %v367
    %v369 = vsel %vm366, %v368, %v364
    %v370 = vmul.f32 %v340, %v369
    %v371 = vld [vmem:[%s6] sm:$0xff]
    %v372 = vld [vmem:[%s6 + $0x8] sm:$0xff]
    %v373 = vld [vmem:[%s6 + $0x10] sm:$0xff]
    %v374 = vld [vmem:[%s6 + $0x18] sm:$0xff]
    %v375 = vld [vmem:[%s6 + $0x20] sm:$0xff]
    %v376 = vld [vmem:[%s6 + $0x28] sm:$0xff]
    %v377 = vld [vmem:[%s6 + $0x30] sm:$0xff]
    %v378 = vld [vmem:[%s6 + $0x38] sm:$0xff]
    %v379 = vld [vmem:[%s6 + $0x40] sm:$0xff]
    %v380 = vld [vmem:[%s6 + $0x48] sm:$0xff]
    %v381 = vld [vmem:[%s6 + $0x50] sm:$0xff]
    %v382 = vld [vmem:[%s6 + $0x58] sm:$0xff]
    %v383 = vld [vmem:[%s6 + $0x60] sm:$0xff]
    %v384 = vld [vmem:[%s6 + $0x68] sm:$0xff]
    %v385 = vld [vmem:[%s6 + $0x70] sm:$0xff]
    %v386 = vld [vmem:[%s6 + $0x78] sm:$0xff]
    %v387 = vld [vmem:[%s7] sm:$0x1]
    %v389 = vperm.slane %v387, 0
    %391 = vmatpush.msra.mxu0 %v386
    %392 = vmatpush.msra.mxu0 %v385
    %393 = vmatpush.msra.mxu0 %v384
    %394 = vmatpush.msra.mxu0 %v383
    %395 = vmatpush.msra.mxu0 %v382
    %396 = vmatpush.msra.mxu0 %v381
    %397 = vmatpush.msra.mxu0 %v380
    %398 = vmatpush.msra.mxu0 %v379
    %399 = vmatpush.msra.mxu0 %v378
    %400 = vmatpush.msra.mxu0 %v377
    %401 = vmatpush.msra.mxu0 %v376
    %402 = vmatpush.msra.mxu0 %v375
    %403 = vmatpush.msra.mxu0 %v374
    %404 = vmatpush.msra.mxu0 %v373
    %405 = vmatpush.msra.mxu0 %v372
    %406 = vmatpush.msra.mxu0 %v371
    %407 = vmatmul.f32.gmra.mxu0 %v355
    %v408 = vpop.f32.mrf.mxu0
    %v409 = vadd.f32 %v389, %v408
    %410 = vmatmul.f32.gmra.mxu0 %v370
    %v411 = vpop.f32.mrf.mxu0
    %v412 = vadd.f32 %v389, %v411
    %413 = vdwg.mxu0
    %414 = vst.msk [vmem:[#allocation2] sm:$0xff] %vm52, %v409
    %415 = vst.msk [vmem:[#allocation2 + $0x8] sm:$0xff] %vm52, %v412
    // Predicated region
    $region34: #{mhswa_forward.1} parent=1 // pred_check
      _
    $region35: #{mhswa_forward.1} parent=1 // pred_check_branch
      %417 = sbr.rel (0) target = $region37
    $region36: #{mhswa_forward.1} parent=1 // pred_region
      %419 = vsyncadd [#allocation3], 0
      %s420 = sshll.u32 [#allocation2], 4
      %s421 = int_to_ptr.vmem [resolvable:$true] %s420
      %s422 = sshll.u32 %s8, 4
      %s423 = int_to_ptr.hbm [resolvable:$true] %s422
      %428 = dma.vmem_to_hbm [thread:$0]  %s421, 256, %s423, [#allocation3], 128, 128, 8
    $region37: #{mhswa_forward.1} parent=1 // pred_fallthru
      _
    // Predicated region
    $region38: #{mhswa_forward.1} parent=1 // pred_check
      _
    $region39: #{mhswa_forward.1} parent=1 // pred_check_branch
      %430 = sbr.rel (0) target = $region41
    $region40: #{mhswa_forward.1} parent=1 // pred_region
      %432 = dma.done [#allocation3], 256
    $region41: #{mhswa_forward.1} parent=1 // pred_fallthru
      _
    %433 = vsyncpa [#allocation3], 1

</llo_original>
